<compile_context>
chip_gen: v7x
topology: tpu7x:2x2x1
jax: 0.10.0
libtpu: 0.0.40
codegen_flags: <defaults>
</compile_context>

<pallas_src>
import math
import jax
import jax.numpy as jnp
from jax.experimental import pallas as pl
from jax.experimental.pallas import tpu as pltpu


def make_mha_kernel():
    def mha_kernel(q_ref, k_ref, v_ref,
                   wq_ref, bq_ref, wk_ref, bk_ref, wv_ref, bv_ref,
                   wo_ref, bo_ref,
                   out_ref, acc_ref):
        # q_ref          : (1, Tq, D)   query tile (current batch element)
        # k_ref / v_ref  : (1, S,  D)   full-length key/value rows
        # wq/wk/wv_ref   : (1, D,  Dh)  this head's projection weight (scale folded into wq)
        # bq/bk/bv_ref   : (1, 1,  Dh)  f32 biases (scale folded into bq)
        # wo_ref         : (1, Dh, Do)  this head's slice of the output projection (Do lane-padded)
        # bo_ref         : (1, Do)
        # acc_ref        : (Tq, Do) f32 scratch, accumulates over the head grid axis
        h = pl.program_id(2)
        cdt = wq_ref.dtype                     # MXU operand dtype (bf16 or f32)

        xq = q_ref[0]                          # (Tq, D)
        xk = k_ref[0]                          # (S,  D)
        xv = v_ref[0]

        # Full-depth per-head projections; f32 accumulation, f32 bias add.
        Qh = jnp.dot(xq, wq_ref[0], preferred_element_type=jnp.float32) + bq_ref[0]
        Kh = jnp.dot(xk, wk_ref[0], preferred_element_type=jnp.float32) + bk_ref[0]
        Vh = jnp.dot(xv, wv_ref[0], preferred_element_type=jnp.float32) + bv_ref[0]

        # Scores (Tq, S).  1/sqrt(Dh) already folded into Q via wq/bq.
        s = jnp.einsum('qd,kd->qk', Qh.astype(cdt), Kh.astype(cdt),
                       preferred_element_type=jnp.float32)

        # Numerically stable softmax over keys (all f32 on VPU/EUP).
        s = s - jnp.max(s, axis=-1, keepdims=True)
        p = jnp.exp(s)
        l = jnp.sum(p, axis=-1, keepdims=True)
        r = pl.reciprocal(l, approx=True)
        r = r * (2.0 - l * r)                  # one Newton step -> near-exact parity with torch
        p = p * r

        # Context (Tq, Dh) and this head's contribution to the output projection.
        ctx = jnp.einsum('qk,kd->qd', p.astype(cdt), Vh.astype(cdt),
                         preferred_element_type=jnp.float32)
        part = jnp.dot(ctx.astype(cdt), wo_ref[0], preferred_element_type=jnp.float32)

        @pl.when(h == 0)
        def _():
            acc_ref[...] = jnp.zeros_like(acc_ref)

        acc_ref[...] += part                   # sum over heads == concat(heads) @ Wo.T

        @pl.when(h == pl.num_programs(2) - 1)
        def _():
            out_ref[0] = (acc_ref[...] + bo_ref[...]).astype(out_ref.dtype)

    return mha_kernel


def multi_head_attention(query, key, value, params, head,
                         *, compute_dtype=jnp.bfloat16, q_tile=128):
    """query/key/value: (B, S, D) float32. params: dict of torch-layout weights.

    compute_dtype: MXU operand dtype (bf16 default per review; f32 optional);
    accumulation, biases and softmax stay in float32.
    """
    B, S, D = query.shape
    dh = D // head
    scale = 1.0 / math.sqrt(dh)
    f32 = jnp.float32

    tq = min(q_tile, S)
    assert S % tq == 0, "S must be divisible by the query tile"
    nq = S // tq

    # torch (out, in) -> transposed (in, out) -> head-split (H, D, Dh).
    def split_heads(w):
        return jnp.transpose(w.T.reshape(D, head, dh), (1, 0, 2))

    wq_h = (split_heads(params["wq"]) * scale).astype(compute_dtype)
    wk_h = split_heads(params["wk"]).astype(compute_dtype)
    wv_h = split_heads(params["wv"]).astype(compute_dtype)
    bq_h = (params["bq"] * scale).reshape(head, 1, dh).astype(f32)
    bk_h = params["bk"].reshape(head, 1, dh).astype(f32)
    bv_h = params["bv"].reshape(head, 1, dh).astype(f32)

    # Output projection, head-split, output width lane-padded to a multiple of 128.
    d_pad = -(-D // 128) * 128
    wo_h = params["wo"].T.reshape(head, dh, D)          # [h, f, e] = Wo.T[h*Dh+f, e]
    bo = params["bo"]
    if d_pad != D:
        wo_h = jnp.pad(wo_h, ((0, 0), (0, 0), (0, d_pad - D)))
        bo = jnp.pad(bo, (0, d_pad - D))
    wo_h = wo_h.astype(compute_dtype)
    bo = bo.reshape(1, d_pad).astype(f32)

    q = query.astype(compute_dtype)
    k = key.astype(compute_dtype)
    v = value.astype(compute_dtype)

    q_spec = pl.BlockSpec((1, tq, D), lambda b, t, h: (b, t, 0))
    kv_spec = pl.BlockSpec((1, S, D), lambda b, t, h: (b, 0, 0))
    w_spec = pl.BlockSpec((1, D, dh), lambda b, t, h: (h, 0, 0))
    bqkv_spec = pl.BlockSpec((1, 1, dh), lambda b, t, h: (h, 0, 0))
    wo_spec = pl.BlockSpec((1, dh, d_pad), lambda b, t, h: (h, 0, 0))
    bo_spec = pl.BlockSpec((1, d_pad), lambda b, t, h: (0, 0))
    out_spec = pl.BlockSpec((1, tq, d_pad), lambda b, t, h: (b, t, 0))

    out = pl.pallas_call(
        make_mha_kernel(),
        out_shape=jax.ShapeDtypeStruct((B, S, d_pad), query.dtype),
        grid_spec=pltpu.PrefetchScalarGridSpec(
            num_scalar_prefetch=0,
            grid=(B, nq, head),
            in_specs=[q_spec, kv_spec, kv_spec,
                      w_spec, bqkv_spec,
                      w_spec, bqkv_spec,
                      w_spec, bqkv_spec,
                      wo_spec, bo_spec],
            out_specs=out_spec,
            scratch_shapes=[pltpu.VMEM((tq, d_pad), jnp.float32)]),
        compiler_params=pltpu.CompilerParams(
            dimension_semantics=("parallel", "parallel", "arbitrary"),
            # Safe on all generations (v7x physical VMEM/TC = 64 MiB); irrelevant at toy sizes
            # but leaves headroom for real tiles.
            vmem_limit_bytes=48 * 1024 * 1024),
    )(q, k, v, wq_h, bq_h, wk_h, bk_h, wv_h, bv_h, wo_h, bo)

    return out[..., :D] if d_pad != D else out


def reference_mha(query, key, value, params, head):
    """Pure-JAX replica of the PyTorch forward (eval mode, mask=None)."""
    B, S, D = query.shape
    dh = D // head

    def lin(x, w, b):
        return x @ w.T + b

    q = lin(query, params["wq"], params["bq"]).reshape(B, S, head, dh).transpose(0, 2, 1, 3)
    k = lin(key, params["wk"], params["bk"]).reshape(B, S, head, dh).transpose(0, 2, 1, 3)
    v = lin(value, params["wv"], params["bv"]).reshape(B, S, head, dh).transpose(0, 2, 1, 3)
    t = jnp.einsum("bhqd,bhkd->bhqk", q, k) / math.sqrt(dh)
    p = jax.nn.softmax(t, axis=-1)
    x = jnp.einsum("bhqk,bhkd->bhqd", p, v)
    x = x.transpose(0, 2, 1, 3).reshape(B, S, D)
    return lin(x, params["wo"], params["bo"])


if __name__ == "__main__":
    B, S, D, H = 2, 8, 32, 4

    key0 = jax.random.PRNGKey(0)
    keys = jax.random.split(key0, 12)

    # Deterministic parameter init (torch Linear layout: weight (out, in), bias (out,)).
    scale = 1.0 / math.sqrt(D)
    params = {
        "wq": jax.random.uniform(keys[0], (D, D), jnp.float32, -scale, scale),
        "bq": jax.random.uniform(keys[1], (D,), jnp.float32, -scale, scale),
        "wk": jax.random.uniform(keys[2], (D, D), jnp.float32, -scale, scale),
        "bk": jax.random.uniform(keys[3], (D,), jnp.float32, -scale, scale),
        "wv": jax.random.uniform(keys[4], (D, D), jnp.float32, -scale, scale),
        "bv": jax.random.uniform(keys[5], (D,), jnp.float32, -scale, scale),
        "wo": jax.random.uniform(keys[6], (D, D), jnp.float32, -scale, scale),
        "bo": jax.random.uniform(keys[7], (D,), jnp.float32, -scale, scale),
    }

    query = jax.random.normal(keys[8], (B, S, D), jnp.float32)
    key_in = jax.random.normal(keys[9], (B, S, D), jnp.float32)
    value = jax.random.normal(keys[10], (B, S, D), jnp.float32)

    ref = reference_mha(query, key_in, value, params, H)

    # Default: bf16 MXU operands, f32 accumulation / softmax.
    out_bf16 = multi_head_attention(query, key_in, value, params, H)
    out_bf16 = jax.block_until_ready(out_bf16)
    assert out_bf16.shape == (B, S, D)
    assert jnp.allclose(out_bf16, ref, atol=5e-2, rtol=5e-2), "bf16 kernel mismatch vs reference"

    # f32 MXU operands (Newton-refined reciprocal -> near-exact parity).
    out_f32 = multi_head_attention(query, key_in, value, params, H,
                                   compute_dtype=jnp.float32)
    out_f32 = jax.block_until_ready(out_f32)
    assert out_f32.shape == (B, S, D)
    assert jnp.allclose(out_f32, ref, atol=1e-3, rtol=1e-3), "f32 kernel mismatch vs reference"

    print("KERNEL_OK")
</pallas_src>

<mosaic_0001>
module attributes {stable_mosaic.version = 11 : i64} {
  func.func @mha_kernel(%arg0: i32, %arg1: i32, %arg2: i32, %arg3: memref<1x8x32xbf16, #tpu.memory_space<vmem>>, %arg4: memref<1x8x32xbf16, #tpu.memory_space<vmem>>, %arg5: memref<1x8x32xbf16, #tpu.memory_space<vmem>>, %arg6: memref<1x32x8xbf16, #tpu.memory_space<vmem>>, %arg7: memref<1x1x8xf32, #tpu.memory_space<vmem>>, %arg8: memref<1x32x8xbf16, #tpu.memory_space<vmem>>, %arg9: memref<1x1x8xf32, #tpu.memory_space<vmem>>, %arg10: memref<1x32x8xbf16, #tpu.memory_space<vmem>>, %arg11: memref<1x1x8xf32, #tpu.memory_space<vmem>>, %arg12: memref<1x8x128xbf16, #tpu.memory_space<vmem>>, %arg13: memref<1x128xf32, #tpu.memory_space<vmem>>, %arg14: memref<1x8x128xf32, #tpu.memory_space<vmem>>, %arg15: memref<8x128xf32, #tpu.memory_space<vmem>>) attributes {dimension_semantics = [#tpu.dimension_semantics<parallel>, #tpu.dimension_semantics<parallel>, #tpu.dimension_semantics<arbitrary>], iteration_bounds = array<i64: 2, 1, 4>, scalar_prefetch = 0 : i64, scratch_operands = 1 : i64, tpu.core_type = #tpu.core_type<tc>, window_params = [{transform_indices = @transform_0, window_bounds = array<i64: 1, 8, 32>}, {transform_indices = @transform_1, window_bounds = array<i64: 1, 8, 32>}, {transform_indices = @transform_2, window_bounds = array<i64: 1, 8, 32>}, {transform_indices = @transform_3, window_bounds = array<i64: 1, 32, 8>}, {transform_indices = @transform_4, window_bounds = array<i64: 1, 1, 8>}, {transform_indices = @transform_5, window_bounds = array<i64: 1, 32, 8>}, {transform_indices = @transform_6, window_bounds = array<i64: 1, 1, 8>}, {transform_indices = @transform_7, window_bounds = array<i64: 1, 32, 8>}, {transform_indices = @transform_8, window_bounds = array<i64: 1, 1, 8>}, {transform_indices = @transform_9, window_bounds = array<i64: 1, 8, 128>}, {pipeline_mode = #tpu.pipeline_mode<synchronous>, transform_indices = @transform_10, window_bounds = array<i64: 1, 128>}, {transform_indices = @transform_11, window_bounds = array<i64: 1, 8, 128>}]} {
    %c0 = arith.constant 0 : index
    %c0_0 = arith.constant 0 : index
    %c0_1 = arith.constant 0 : index
    %0 = vector.load %arg3[%c0, %c0_0, %c0_1] : memref<1x8x32xbf16, #tpu.memory_space<vmem>>, vector<1x8x32xbf16>
    %1 = vector.shape_cast %0 : vector<1x8x32xbf16> to vector<8x32xbf16>
    %c0_2 = arith.constant 0 : index
    %c0_3 = arith.constant 0 : index
    %c0_4 = arith.constant 0 : index
    %2 = vector.load %arg4[%c0_2, %c0_3, %c0_4] : memref<1x8x32xbf16, #tpu.memory_space<vmem>>, vector<1x8x32xbf16>
    %3 = vector.shape_cast %2 : vector<1x8x32xbf16> to vector<8x32xbf16>
    %c0_5 = arith.constant 0 : index
    %c0_6 = arith.constant 0 : index
    %c0_7 = arith.constant 0 : index
    %4 = vector.load %arg5[%c0_5, %c0_6, %c0_7] : memref<1x8x32xbf16, #tpu.memory_space<vmem>>, vector<1x8x32xbf16>
    %5 = vector.shape_cast %4 : vector<1x8x32xbf16> to vector<8x32xbf16>
    %c0_8 = arith.constant 0 : index
    %c0_9 = arith.constant 0 : index
    %c0_10 = arith.constant 0 : index
    %6 = vector.load %arg6[%c0_8, %c0_9, %c0_10] : memref<1x32x8xbf16, #tpu.memory_space<vmem>>, vector<1x32x8xbf16>
    %7 = vector.shape_cast %6 : vector<1x32x8xbf16> to vector<32x8xbf16>
    %cst = arith.constant dense<0.000000e+00> : vector<8x8xf32>
    %8 = tpu.matmul %1, %7, %cst {dimension_numbers = #tpu.dot_dimension_numbers<[1], [0], [0], [1], [0, 0, 1, 1], [], []>} : vector<8x32xbf16>, vector<32x8xbf16>, vector<8x8xf32> -> vector<8x8xf32>
    %c0_11 = arith.constant 0 : index
    %c0_12 = arith.constant 0 : index
    %c0_13 = arith.constant 0 : index
    %9 = vector.load %arg7[%c0_11, %c0_12, %c0_13] : memref<1x1x8xf32, #tpu.memory_space<vmem>>, vector<1x1x8xf32>
    %10 = vector.shape_cast %9 : vector<1x1x8xf32> to vector<1x8xf32>
    %11 = vector.broadcast %10 : vector<1x8xf32> to vector<8x8xf32>
    %12 = arith.addf %8, %11 : vector<8x8xf32>
    %c0_14 = arith.constant 0 : index
    %c0_15 = arith.constant 0 : index
    %c0_16 = arith.constant 0 : index
    %13 = vector.load %arg8[%c0_14, %c0_15, %c0_16] : memref<1x32x8xbf16, #tpu.memory_space<vmem>>, vector<1x32x8xbf16>
    %14 = vector.shape_cast %13 : vector<1x32x8xbf16> to vector<32x8xbf16>
    %cst_17 = arith.constant dense<0.000000e+00> : vector<8x8xf32>
    %15 = tpu.matmul %3, %14, %cst_17 {dimension_numbers = #tpu.dot_dimension_numbers<[1], [0], [0], [1], [0, 0, 1, 1], [], []>} : vector<8x32xbf16>, vector<32x8xbf16>, vector<8x8xf32> -> vector<8x8xf32>
    %c0_18 = arith.constant 0 : index
    %c0_19 = arith.constant 0 : index
    %c0_20 = arith.constant 0 : index
    %16 = vector.load %arg9[%c0_18, %c0_19, %c0_20] : memref<1x1x8xf32, #tpu.memory_space<vmem>>, vector<1x1x8xf32>
    %17 = vector.shape_cast %16 : vector<1x1x8xf32> to vector<1x8xf32>
    %18 = vector.broadcast %17 : vector<1x8xf32> to vector<8x8xf32>
    %19 = arith.addf %15, %18 : vector<8x8xf32>
    %c0_21 = arith.constant 0 : index
    %c0_22 = arith.constant 0 : index
    %c0_23 = arith.constant 0 : index
    %20 = vector.load %arg10[%c0_21, %c0_22, %c0_23] : memref<1x32x8xbf16, #tpu.memory_space<vmem>>, vector<1x32x8xbf16>
    %21 = vector.shape_cast %20 : vector<1x32x8xbf16> to vector<32x8xbf16>
    %cst_24 = arith.constant dense<0.000000e+00> : vector<8x8xf32>
    %22 = tpu.matmul %5, %21, %cst_24 {dimension_numbers = #tpu.dot_dimension_numbers<[1], [0], [0], [1], [0, 0, 1, 1], [], []>} : vector<8x32xbf16>, vector<32x8xbf16>, vector<8x8xf32> -> vector<8x8xf32>
    %c0_25 = arith.constant 0 : index
    %c0_26 = arith.constant 0 : index
    %c0_27 = arith.constant 0 : index
    %23 = vector.load %arg11[%c0_25, %c0_26, %c0_27] : memref<1x1x8xf32, #tpu.memory_space<vmem>>, vector<1x1x8xf32>
    %24 = vector.shape_cast %23 : vector<1x1x8xf32> to vector<1x8xf32>
    %25 = vector.broadcast %24 : vector<1x8xf32> to vector<8x8xf32>
    %26 = arith.addf %22, %25 : vector<8x8xf32>
    %27 = arith.truncf %12 : vector<8x8xf32> to vector<8x8xbf16>
    %28 = arith.truncf %19 : vector<8x8xf32> to vector<8x8xbf16>
    "tpu.trace_start"() <{level = 10 : i32, message = "qd,kd->qk"}> : () -> ()
    %cst_28 = arith.constant dense<0.000000e+00> : vector<8x8xf32>
    %29 = tpu.matmul %27, %28, %cst_28 {dimension_numbers = #tpu.dot_dimension_numbers<[1], [1], [0], [0], [0, 0, 1, 0], [], []>} : vector<8x8xbf16>, vector<8x8xbf16>, vector<8x8xf32> -> vector<8x8xf32>
    "tpu.trace_stop"() : () -> ()
    %cst_29 = arith.constant dense<0xFF800000> : vector<8xf32>
    %30 = vector.multi_reduction <maximumf>, %29, %cst_29 [1] : vector<8x8xf32> to vector<8xf32>
    %31 = vector.shape_cast %30 : vector<8xf32> to vector<8x1xf32>
    %32 = vector.broadcast %31 : vector<8x1xf32> to vector<8x8xf32>
    %33 = arith.subf %29, %32 : vector<8x8xf32>
    %34 = math.exp %33 : vector<8x8xf32>
    %cst_30 = arith.constant dense<0.000000e+00> : vector<8xf32>
    %35 = vector.multi_reduction <add>, %34, %cst_30 [1] : vector<8x8xf32> to vector<8xf32>
    %36 = vector.shape_cast %35 : vector<8xf32> to vector<8x1xf32>
    %37 = tpu.reciprocal %36 {approx = true} : vector<8x1xf32> -> vector<8x1xf32>
    %38 = arith.mulf %36, %37 : vector<8x1xf32>
    %cst_31 = arith.constant 2.000000e+00 : f32
    %39 = vector.broadcast %cst_31 : f32 to vector<8x1xf32>
    %40 = arith.subf %39, %38 : vector<8x1xf32>
    %41 = arith.mulf %37, %40 : vector<8x1xf32>
    %42 = vector.broadcast %41 : vector<8x1xf32> to vector<8x8xf32>
    %43 = arith.mulf %34, %42 : vector<8x8xf32>
    %44 = arith.truncf %43 : vector<8x8xf32> to vector<8x8xbf16>
    %45 = arith.truncf %26 : vector<8x8xf32> to vector<8x8xbf16>
    "tpu.trace_start"() <{level = 10 : i32, message = "qk,kd->qd"}> : () -> ()
    %cst_32 = arith.constant dense<0.000000e+00> : vector<8x8xf32>
    %46 = tpu.matmul %44, %45, %cst_32 {dimension_numbers = #tpu.dot_dimension_numbers<[1], [0], [0], [1], [0, 0, 1, 1], [], []>} : vector<8x8xbf16>, vector<8x8xbf16>, vector<8x8xf32> -> vector<8x8xf32>
    "tpu.trace_stop"() : () -> ()
    %47 = arith.truncf %46 : vector<8x8xf32> to vector<8x8xbf16>
    %c0_33 = arith.constant 0 : index
    %c0_34 = arith.constant 0 : index
    %c0_35 = arith.constant 0 : index
    %48 = vector.load %arg12[%c0_33, %c0_34, %c0_35] : memref<1x8x128xbf16, #tpu.memory_space<vmem>>, vector<1x8x128xbf16>
    %49 = vector.shape_cast %48 : vector<1x8x128xbf16> to vector<8x128xbf16>
    %cst_36 = arith.constant dense<0.000000e+00> : vector<8x128xf32>
    %50 = tpu.matmul %47, %49, %cst_36 {dimension_numbers = #tpu.dot_dimension_numbers<[1], [0], [0], [1], [0, 0, 1, 1], [], []>} : vector<8x8xbf16>, vector<8x128xbf16>, vector<8x128xf32> -> vector<8x128xf32>
    %c0_i32 = arith.constant 0 : i32
    %51 = arith.cmpi eq, %arg2, %c0_i32 : i32
    %52 = arith.extui %51 : i1 to i32
    %c0_i32_37 = arith.constant 0 : i32
    %53 = arith.cmpi ne, %52, %c0_i32_37 : i32
    scf.if %53 {
      %cst_43 = arith.constant 0.000000e+00 : f32
      %60 = vector.broadcast %cst_43 : f32 to vector<8x128xf32>
      %c0_44 = arith.constant 0 : index
      %c0_45 = arith.constant 0 : index
      %61 = vector.load %arg15[%c0_44, %c0_45] : memref<8x128xf32, #tpu.memory_space<vmem>>, vector<8x128xf32>
      tpu.vector_store %arg15[%c0_44, %c0_45], %60 {strides = array<i32>} : memref<8x128xf32, #tpu.memory_space<vmem>>, vector<8x128xf32>,
    } else {
    }
    %c0_38 = arith.constant 0 : index
    %c0_39 = arith.constant 0 : index
    %54 = vector.load %arg15[%c0_38, %c0_39] : memref<8x128xf32, #tpu.memory_space<vmem>>, vector<8x128xf32>
    %55 = arith.addf %54, %50 : vector<8x128xf32>
    %c0_40 = arith.constant 0 : index
    %c0_41 = arith.constant 0 : index
    %56 = vector.load %arg15[%c0_40, %c0_41] : memref<8x128xf32, #tpu.memory_space<vmem>>, vector<8x128xf32>
    tpu.vector_store %arg15[%c0_40, %c0_41], %55 {strides = array<i32>} : memref<8x128xf32, #tpu.memory_space<vmem>>, vector<8x128xf32>,
    %c3_i32 = arith.constant 3 : i32
    %57 = arith.cmpi eq, %arg2, %c3_i32 : i32
    %58 = arith.extui %57 : i1 to i32
    %c0_i32_42 = arith.constant 0 : i32
    %59 = arith.cmpi ne, %58, %c0_i32_42 : i32
    scf.if %59 {
      %c0_43 = arith.constant 0 : index
      %c0_44 = arith.constant 0 : index
      %60 = vector.load %arg15[%c0_43, %c0_44] : memref<8x128xf32, #tpu.memory_space<vmem>>, vector<8x128xf32>
      %c0_45 = arith.constant 0 : index
      %c0_46 = arith.constant 0 : index
      %61 = vector.load %arg13[%c0_45, %c0_46] : memref<1x128xf32, #tpu.memory_space<vmem>>, vector<1x128xf32>
      %62 = vector.broadcast %61 : vector<1x128xf32> to vector<8x128xf32>
      %63 = arith.addf %60, %62 : vector<8x128xf32>
      %c0_47 = arith.constant 0 : index
      %c0_48 = arith.constant 0 : index
      %c0_49 = arith.constant 0 : index
      %64 = vector.load %arg14[%c0_47, %c0_48, %c0_49] : memref<1x8x128xf32, #tpu.memory_space<vmem>>, vector<1x8x128xf32>
      %65 = vector.shape_cast %64 : vector<1x8x128xf32> to vector<8x128xf32>
      %66 = vector.shape_cast %63 : vector<8x128xf32> to vector<1x8x128xf32>
      tpu.vector_store %arg14[%c0_47, %c0_48, %c0_49], %66 {strides = array<i32>} : memref<1x8x128xf32, #tpu.memory_space<vmem>>, vector<1x8x128xf32>,
    } else {
    }
    return
  }
  func.func @transform_0(%arg0: i32, %arg1: i32, %arg2: i32) -> (i32, i32, i32) {
    %c0_i32 = arith.constant 0 : i32
    %c0_i32_0 = arith.constant 0 : i32
    return %arg0, %arg1, %c0_i32 : i32, i32, i32
  }
  func.func @transform_1(%arg0: i32, %arg1: i32, %arg2: i32) -> (i32, i32, i32) {
    %c0_i32 = arith.constant 0 : i32
    %c0_i32_0 = arith.constant 0 : i32
    %c0_i32_1 = arith.constant 0 : i32
    return %arg0, %c0_i32, %c0_i32_0 : i32, i32, i32
  }
  func.func @transform_2(%arg0: i32, %arg1: i32, %arg2: i32) -> (i32, i32, i32) {
    %c0_i32 = arith.constant 0 : i32
    %c0_i32_0 = arith.constant 0 : i32
    %c0_i32_1 = arith.constant 0 : i32
    return %arg0, %c0_i32, %c0_i32_0 : i32, i32, i32
  }
  func.func @transform_3(%arg0: i32, %arg1: i32, %arg2: i32) -> (i32, i32, i32) {
    %c0_i32 = arith.constant 0 : i32
    %c0_i32_0 = arith.constant 0 : i32
    %c0_i32_1 = arith.constant 0 : i32
    return %arg2, %c0_i32, %c0_i32_0 : i32, i32, i32
  }
  func.func @transform_4(%arg0: i32, %arg1: i32, %arg2: i32) -> (i32, i32, i32) {
    %c0_i32 = arith.constant 0 : i32
    %c0_i32_0 = arith.constant 0 : i32
    %c0_i32_1 = arith.constant 0 : i32
    return %arg2, %c0_i32, %c0_i32_0 : i32, i32, i32
  }
  func.func @transform_5(%arg0: i32, %arg1: i32, %arg2: i32) -> (i32, i32, i32) {
    %c0_i32 = arith.constant 0 : i32
    %c0_i32_0 = arith.constant 0 : i32
    %c0_i32_1 = arith.constant 0 : i32
    return %arg2, %c0_i32, %c0_i32_0 : i32, i32, i32
  }
  func.func @transform_6(%arg0: i32, %arg1: i32, %arg2: i32) -> (i32, i32, i32) {
    %c0_i32 = arith.constant 0 : i32
    %c0_i32_0 = arith.constant 0 : i32
    %c0_i32_1 = arith.constant 0 : i32
    return %arg2, %c0_i32, %c0_i32_0 : i32, i32, i32
  }
  func.func @transform_7(%arg0: i32, %arg1: i32, %arg2: i32) -> (i32, i32, i32) {
    %c0_i32 = arith.constant 0 : i32
    %c0_i32_0 = arith.constant 0 : i32
    %c0_i32_1 = arith.constant 0 : i32
    return %arg2, %c0_i32, %c0_i32_0 : i32, i32, i32
  }
  func.func @transform_8(%arg0: i32, %arg1: i32, %arg2: i32) -> (i32, i32, i32) {
    %c0_i32 = arith.constant 0 : i32
    %c0_i32_0 = arith.constant 0 : i32
    %c0_i32_1 = arith.constant 0 : i32
    return %arg2, %c0_i32, %c0_i32_0 : i32, i32, i32
  }
  func.func @transform_9(%arg0: i32, %arg1: i32, %arg2: i32) -> (i32, i32, i32) {
    %c0_i32 = arith.constant 0 : i32
    %c0_i32_0 = arith.constant 0 : i32
    %c0_i32_1 = arith.constant 0 : i32
    return %arg2, %c0_i32, %c0_i32_0 : i32, i32, i32
  }
  func.func @transform_10(%arg0: i32, %arg1: i32, %arg2: i32) -> (i32, i32) {
    %c0_i32 = arith.constant 0 : i32
    %c0_i32_0 = arith.constant 0 : i32
    %c0_i32_1 = arith.constant 0 : i32
    return %c0_i32, %c0_i32_0 : i32, i32
  }
  func.func @transform_11(%arg0: i32, %arg1: i32, %arg2: i32) -> (i32, i32, i32) {
    %c0_i32 = arith.constant 0 : i32
    %c0_i32_0 = arith.constant 0 : i32
    return %arg0, %arg1, %c0_i32 : i32, i32, i32
  }
}

</mosaic_0001>

<llo_original>
// kernel: tpu_custom_call.1
$region0: #{tpu_custom_call.1}
  #allocation0 [shape = 'u32[]', space=smem, size = 0x4, offset = 0x4, fixed_abs, tag = 'smem constant byte address 0x4 - core index']
  #allocation1 [shape = 'u32[144,128]{1,0:T(1,128)}', space=vmem, size = 0x12000, scoped, tag = 'internal scratch']
  #allocation2 [shape = 'f32[8,128]{1,0:T(8,128)}', space=vmem, size = 0x1000, scoped, tag = 'scratch operand']
  %s0 = inlined_call_operand.vmem [shape: bf16[2,8,32], index: 0, kind: input, shape index: {}]
  %s1 = inlined_call_operand.vmem [shape: bf16[2,8,32], index: 1, kind: input, shape index: {}]
  %s2 = inlined_call_operand.vmem [shape: bf16[2,8,32], index: 2, kind: input, shape index: {}]
  %s3 = inlined_call_operand.vmem [shape: bf16[4,32,8], index: 3, kind: input, shape index: {}]
  %s4 = inlined_call_operand.vmem [shape: f32[4,1,8], index: 4, kind: input, shape index: {}]
  %s5 = inlined_call_operand.vmem [shape: bf16[4,32,8], index: 5, kind: input, shape index: {}]
  %s6 = inlined_call_operand.vmem [shape: f32[4,1,8], index: 6, kind: input, shape index: {}]
  %s7 = inlined_call_operand.vmem [shape: bf16[4,32,8], index: 7, kind: input, shape index: {}]
  %s8 = inlined_call_operand.vmem [shape: f32[4,1,8], index: 8, kind: input, shape index: {}]
  %s9 = inlined_call_operand.vmem [shape: bf16[4,8,128], index: 9, kind: input, shape index: {}]
  %s10 = inlined_call_operand.vmem [shape: f32[1,128], index: 10, kind: input, shape index: {}]
  %s11 = inlined_call_operand.hbm [shape: f32[2,8,128], index: 11, kind: output, shape index: {}]
  %s12 = sld [smem:[#allocation0]]
  $region85: #{tpu_custom_call.1} parent=0
    _
  %s14 = ssub.s32 1, %s12
  %s15 = scalar_select 0, %s14, %s12
  $region1: #{tpu_custom_call.1} parent=0
    #allocation3 [shape = 'u8[8192]{0}', space=vmem, size = 0x2000, scoped, tag = 'output window, operand 0']
    #allocation4 [shape = 's32[2]{0}', space=sflag, size = 0x8, scoped, tag = 'scoped memory for tpu_custom_call.1']
    %16 = vsyncpa [#allocation4], 0
    %s17 = scalar_lea.sflag [#allocation4], 1
    %18 = vsyncpa %s17, 0
    loop: start=0, step=1, limit=10
    $region2: #{tpu_custom_call.1} parent=1 // loop_pre_header
      _
    $region3: #{tpu_custom_call.1} parent=1 // loop_header
      %s20 = sphi 0, %s24
      %p21 = scmp.ge.s32.totalorder %s20, 10
      %s27 = sphi 0, %s46
      %s28 = sphi 0, %s42
      %s29 = sphi 0, %s38
      %s30 = sphi 0, %s27
      %s31 = sphi 0, %s28
      %s32 = sphi 0, %s29
      %s33 = sphi 0, %s30
      %s34 = sphi 0, %s31
      %s35 = sphi 0, %s32
      %s51 = sphi 0, %s53
      %s54 = sphi 0, %s51
      %s55 = sphi 0, %s54
      %s71 = sphi 0, %s55
      %s77 = sphi 0, %s79
      %s80 = sphi 0, %s77
      %s81 = sphi 0, %s80
      %s97 = sphi 0, %s81
      %s103 = sphi 0, %s105
      %s106 = sphi 0, %s103
      %s107 = sphi 0, %s106
      %s123 = sphi 0, %s107
      %s129 = sphi 0, %s131
      %s132 = sphi 0, %s129
      %s133 = sphi 0, %s132
      %s149 = sphi 0, %s133
      %s155 = sphi 0, %s157
      %s158 = sphi 0, %s155
      %s159 = sphi 0, %s158
      %s175 = sphi 0, %s159
      %s181 = sphi 0, %s183
      %s184 = sphi 0, %s181
      %s185 = sphi 0, %s184
      %s201 = sphi 0, %s185
      %s207 = sphi 0, %s209
      %s210 = sphi 0, %s207
      %s211 = sphi 0, %s210
      %s227 = sphi 0, %s211
      %s233 = sphi 0, %s235
      %s236 = sphi 0, %s233
      %s237 = sphi 0, %s236
      %s253 = sphi 0, %s237
      %s259 = sphi 0, %s261
      %s262 = sphi 0, %s259
      %s263 = sphi 0, %s262
      %s279 = sphi 0, %s263
      %s285 = sphi 0, %s287
      %s288 = sphi 0, %s285
      %s289 = sphi 0, %s288
      %s305 = sphi 0, %s289
      %s309 = sphi 0, %s309
      %s311 = sphi 0, %s309
      %s312 = sphi 0, %s311
      %s326 = sphi 0, %s312
      %s334 = sphi 0, %s336
      %s337 = sphi 0, %s334
      %s338 = sphi 0, %s337
      %s354 = sphi 0, %s338
    $region4: #{tpu_custom_call.1} parent=1 // loop_header_branch
      %23 = sbr.rel (%p21) target = $region8
    $region5: #{tpu_custom_call.1} parent=1 // loop_body
      %s25 = ssub.s32 %s20, 1
      %s26 = ssub.s32 %s20, 2
      %s36 = sadd.s32 1, %s29
      %p37 = scmp.ge.s32.totalorder %s36, 4
      %s38 = scalar_select %p37, 0, %s36
      %s39 = sadd.s32 1, %s28
      %s40 = scalar_select %p37, %s39, %s28
      %p41 = scmp.ge.s32.totalorder %s40, 1
      %s42 = scalar_select %p41, 0, %s40
      %s43 = sadd.s32 1, %s27
      %s44 = scalar_select %p41, %s43, %s27
      %p45 = scmp.ge.s32.totalorder %s44, 2
      %s46 = scalar_select %p45, 0, %s44
      %s47 = ssub.s32 %s27, %s46
      %s48 = ssub.s32 %s28, %s42
      %s49 = sor.u32 %s47, %s48
      %p50 = scmp.eq.s32.totalorder %s49, 0
      %s52 = sadd.s32 %s51, 1
      %s53 = scalar_select %p50, %s51, %s52
      %p56 = pneg %p50
      %p57 = scmp.eq.s32.totalorder %s20, 7
      %p58 = por %p56, %p57
      %p59 = scmp.ne.s32.totalorder %s51, %s54
      %p60 = scmp.eq.s32.totalorder %s20, 0
      %p61 = por %p59, %p60
      %p62 = scmp.ne.s32.totalorder %s51, %s54
      %p63 = scmp.eq.s32.totalorder %s25, 7
      %p64 = por %p62, %p63
      %p65 = scmp.ne.s32.totalorder %s54, %s55
      %p66 = scmp.eq.s32.totalorder %s25, 0
      %p67 = por %p65, %p66
      %p68 = scmp.ne.s32.totalorder %s54, %s55
      %p69 = scmp.eq.s32.totalorder %s26, 7
      %p70 = por %p68, %p69
      %p72 = scmp.ne.s32.totalorder %s55, %s71
      %p73 = scmp.eq.s32.totalorder %s26, 0
      %p74 = por %p72, %p73
      %s75 = ssub.s32 %s27, %s46
      %p76 = scmp.eq.s32.totalorder %s75, 0
      %s78 = sadd.s32 %s77, 1
      %s79 = scalar_select %p76, %s77, %s78
      %p82 = pneg %p76
      %p83 = scmp.eq.s32.totalorder %s20, 7
      %p84 = por %p82, %p83
      %p85 = scmp.ne.s32.totalorder %s77, %s80
      %p86 = scmp.eq.s32.totalorder %s20, 0
      %p87 = por %p85, %p86
      %p88 = scmp.ne.s32.totalorder %s77, %s80
      %p89 = scmp.eq.s32.totalorder %s25, 7
      %p90 = por %p88, %p89
      %p91 = scmp.ne.s32.totalorder %s80, %s81
      %p92 = scmp.eq.s32.totalorder %s25, 0
      %p93 = por %p91, %p92
      %p94 = scmp.ne.s32.totalorder %s80, %s81
      %p95 = scmp.eq.s32.totalorder %s26, 7
      %p96 = por %p94, %p95
      %p98 = scmp.ne.s32.totalorder %s81, %s97
      %p99 = scmp.eq.s32.totalorder %s26, 0
      %p100 = por %p98, %p99
      %s101 = ssub.s32 %s27, %s46
      %p102 = scmp.eq.s32.totalorder %s101, 0
      %s104 = sadd.s32 %s103, 1
      %s105 = scalar_select %p102, %s103, %s104
      %p108 = pneg %p102
      %p109 = scmp.eq.s32.totalorder %s20, 7
      %p110 = por %p108, %p109
      %p111 = scmp.ne.s32.totalorder %s103, %s106
      %p112 = scmp.eq.s32.totalorder %s20, 0
      %p113 = por %p111, %p112
      %p114 = scmp.ne.s32.totalorder %s103, %s106
      %p115 = scmp.eq.s32.totalorder %s25, 7
      %p116 = por %p114, %p115
      %p117 = scmp.ne.s32.totalorder %s106, %s107
      %p118 = scmp.eq.s32.totalorder %s25, 0
      %p119 = por %p117, %p118
      %p120 = scmp.ne.s32.totalorder %s106, %s107
      %p121 = scmp.eq.s32.totalorder %s26, 7
      %p122 = por %p120, %p121
      %p124 = scmp.ne.s32.totalorder %s107, %s123
      %p125 = scmp.eq.s32.totalorder %s26, 0
      %p126 = por %p124, %p125
      %s127 = ssub.s32 %s29, %s38
      %p128 = scmp.eq.s32.totalorder %s127, 0
      %s130 = sadd.s32 %s129, 1
      %s131 = scalar_select %p128, %s129, %s130
      %p134 = pneg %p128
      %p135 = scmp.eq.s32.totalorder %s20, 7
      %p136 = por %p134, %p135
      %p137 = scmp.ne.s32.totalorder %s129, %s132
      %p138 = scmp.eq.s32.totalorder %s20, 0
      %p139 = por %p137, %p138
      %p140 = scmp.ne.s32.totalorder %s129, %s132
      %p141 = scmp.eq.s32.totalorder %s25, 7
      %p142 = por %p140, %p141
      %p143 = scmp.ne.s32.totalorder %s132, %s133
      %p144 = scmp.eq.s32.totalorder %s25, 0
      %p145 = por %p143, %p144
      %p146 = scmp.ne.s32.totalorder %s132, %s133
      %p147 = scmp.eq.s32.totalorder %s26, 7
      %p148 = por %p146, %p147
      %p150 = scmp.ne.s32.totalorder %s133, %s149
      %p151 = scmp.eq.s32.totalorder %s26, 0
      %p152 = por %p150, %p151
      %s153 = ssub.s32 %s29, %s38
      %p154 = scmp.eq.s32.totalorder %s153, 0
      %s156 = sadd.s32 %s155, 1
      %s157 = scalar_select %p154, %s155, %s156
      %p160 = pneg %p154
      %p161 = scmp.eq.s32.totalorder %s20, 7
      %p162 = por %p160, %p161
      %p163 = scmp.ne.s32.totalorder %s155, %s158
      %p164 = scmp.eq.s32.totalorder %s20, 0
      %p165 = por %p163, %p164
      %p166 = scmp.ne.s32.totalorder %s155, %s158
      %p167 = scmp.eq.s32.totalorder %s25, 7
      %p168 = por %p166, %p167
      %p169 = scmp.ne.s32.totalorder %s158, %s159
      %p170 = scmp.eq.s32.totalorder %s25, 0
      %p171 = por %p169, %p170
      %p172 = scmp.ne.s32.totalorder %s158, %s159
      %p173 = scmp.eq.s32.totalorder %s26, 7
      %p174 = por %p172, %p173
      %p176 = scmp.ne.s32.totalorder %s159, %s175
      %p177 = scmp.eq.s32.totalorder %s26, 0
      %p178 = por %p176, %p177
      %s179 = ssub.s32 %s29, %s38
      %p180 = scmp.eq.s32.totalorder %s179, 0
      %s182 = sadd.s32 %s181, 1
      %s183 = scalar_select %p180, %s181, %s182
      %p186 = pneg %p180
      %p187 = scmp.eq.s32.totalorder %s20, 7
      %p188 = por %p186, %p187
      %p189 = scmp.ne.s32.totalorder %s181, %s184
      %p190 = scmp.eq.s32.totalorder %s20, 0
      %p191 = por %p189, %p190
      %p192 = scmp.ne.s32.totalorder %s181, %s184
      %p193 = scmp.eq.s32.totalorder %s25, 7
      %p194 = por %p192, %p193
      %p195 = scmp.ne.s32.totalorder %s184, %s185
      %p196 = scmp.eq.s32.totalorder %s25, 0
      %p197 = por %p195, %p196
      %p198 = scmp.ne.s32.totalorder %s184, %s185
      %p199 = scmp.eq.s32.totalorder %s26, 7
      %p200 = por %p198, %p199
      %p202 = scmp.ne.s32.totalorder %s185, %s201
      %p203 = scmp.eq.s32.totalorder %s26, 0
      %p204 = por %p202, %p203
      %s205 = ssub.s32 %s29, %s38
      %p206 = scmp.eq.s32.totalorder %s205, 0
      %s208 = sadd.s32 %s207, 1
      %s209 = scalar_select %p206, %s207, %s208
      %p212 = pneg %p206
      %p213 = scmp.eq.s32.totalorder %s20, 7
      %p214 = por %p212, %p213
      %p215 = scmp.ne.s32.totalorder %s207, %s210
      %p216 = scmp.eq.s32.totalorder %s20, 0
      %p217 = por %p215, %p216
      %p218 = scmp.ne.s32.totalorder %s207, %s210
      %p219 = scmp.eq.s32.totalorder %s25, 7
      %p220 = por %p218, %p219
      %p221 = scmp.ne.s32.totalorder %s210, %s211
      %p222 = scmp.eq.s32.totalorder %s25, 0
      %p223 = por %p221, %p222
      %p224 = scmp.ne.s32.totalorder %s210, %s211
      %p225 = scmp.eq.s32.totalorder %s26, 7
      %p226 = por %p224, %p225
      %p228 = scmp.ne.s32.totalorder %s211, %s227
      %p229 = scmp.eq.s32.totalorder %s26, 0
      %p230 = por %p228, %p229
      %s231 = ssub.s32 %s29, %s38
      %p232 = scmp.eq.s32.totalorder %s231, 0
      %s234 = sadd.s32 %s233, 1
      %s235 = scalar_select %p232, %s233, %s234
      %p238 = pneg %p232
      %p239 = scmp.eq.s32.totalorder %s20, 7
      %p240 = por %p238, %p239
      %p241 = scmp.ne.s32.totalorder %s233, %s236
      %p242 = scmp.eq.s32.totalorder %s20, 0
      %p243 = por %p241, %p242
      %p244 = scmp.ne.s32.totalorder %s233, %s236
      %p245 = scmp.eq.s32.totalorder %s25, 7
      %p246 = por %p244, %p245
      %p247 = scmp.ne.s32.totalorder %s236, %s237
      %p248 = scmp.eq.s32.totalorder %s25, 0
      %p249 = por %p247, %p248
      %p250 = scmp.ne.s32.totalorder %s236, %s237
      %p251 = scmp.eq.s32.totalorder %s26, 7
      %p252 = por %p250, %p251
      %p254 = scmp.ne.s32.totalorder %s237, %s253
      %p255 = scmp.eq.s32.totalorder %s26, 0
      %p256 = por %p254, %p255
      %s257 = ssub.s32 %s29, %s38
      %p258 = scmp.eq.s32.totalorder %s257, 0
      %s260 = sadd.s32 %s259, 1
      %s261 = scalar_select %p258, %s259, %s260
      %p264 = pneg %p258
      %p265 = scmp.eq.s32.totalorder %s20, 7
      %p266 = por %p264, %p265
      %p267 = scmp.ne.s32.totalorder %s259, %s262
      %p268 = scmp.eq.s32.totalorder %s20, 0
      %p269 = por %p267, %p268
      %p270 = scmp.ne.s32.totalorder %s259, %s262
      %p271 = scmp.eq.s32.totalorder %s25, 7
      %p272 = por %p270, %p271
      %p273 = scmp.ne.s32.totalorder %s262, %s263
      %p274 = scmp.eq.s32.totalorder %s25, 0
      %p275 = por %p273, %p274
      %p276 = scmp.ne.s32.totalorder %s262, %s263
      %p277 = scmp.eq.s32.totalorder %s26, 7
      %p278 = por %p276, %p277
      %p280 = scmp.ne.s32.totalorder %s263, %s279
      %p281 = scmp.eq.s32.totalorder %s26, 0
      %p282 = por %p280, %p281
      %s283 = ssub.s32 %s29, %s38
      %p284 = scmp.eq.s32.totalorder %s283, 0
      %s286 = sadd.s32 %s285, 1
      %s287 = scalar_select %p284, %s285, %s286
      %p290 = pneg %p284
      %p291 = scmp.eq.s32.totalorder %s20, 7
      %p292 = por %p290, %p291
      %p293 = scmp.ne.s32.totalorder %s285, %s288
      %p294 = scmp.eq.s32.totalorder %s20, 0
      %p295 = por %p293, %p294
      %p296 = scmp.ne.s32.totalorder %s285, %s288
      %p297 = scmp.eq.s32.totalorder %s25, 7
      %p298 = por %p296, %p297
      %p299 = scmp.ne.s32.totalorder %s288, %s289
      %p300 = scmp.eq.s32.totalorder %s25, 0
      %p301 = por %p299, %p300
      %p302 = scmp.ne.s32.totalorder %s288, %s289
      %p303 = scmp.eq.s32.totalorder %s26, 7
      %p304 = por %p302, %p303
      %p306 = scmp.ne.s32.totalorder %s289, %s305
      %p307 = scmp.eq.s32.totalorder %s26, 0
      %p308 = por %p306, %p307
      %s310 = sadd.s32 %s309, 1
      %p313 = scmp.eq.s32.totalorder %s20, 7
      %p314 = scmp.ne.s32.totalorder %s309, %s311
      %p315 = scmp.eq.s32.totalorder %s20, 0
      %p316 = por %p314, %p315
      %p317 = scmp.ne.s32.totalorder %s309, %s311
      %p318 = scmp.eq.s32.totalorder %s25, 7
      %p319 = por %p317, %p318
      %p320 = scmp.ne.s32.totalorder %s311, %s312
      %p321 = scmp.eq.s32.totalorder %s25, 0
      %p322 = por %p320, %p321
      %p323 = scmp.ne.s32.totalorder %s311, %s312
      %p324 = scmp.eq.s32.totalorder %s26, 7
      %p325 = por %p323, %p324
      %p327 = scmp.ne.s32.totalorder %s312, %s326
      %p328 = scmp.eq.s32.totalorder %s26, 0
      %p329 = por %p327, %p328
      %s330 = ssub.s32 %s27, %s46
      %s331 = ssub.s32 %s28, %s42
      %s332 = sor.u32 %s330, %s331
      %p333 = scmp.eq.s32.totalorder %s332, 0
      %s335 = sadd.s32 %s334, 1
      %s336 = scalar_select %p333, %s334, %s335
      %p339 = pneg %p333
      %p340 = scmp.eq.s32.totalorder %s20, 7
      %p341 = por %p339, %p340
      %p342 = scmp.ne.s32.totalorder %s334, %s337
      %p343 = scmp.eq.s32.totalorder %s20, 0
      %p344 = por %p342, %p343
      %p345 = scmp.ne.s32.totalorder %s334, %s337
      %p346 = scmp.eq.s32.totalorder %s25, 7
      %p347 = por %p345, %p346
      %p348 = scmp.ne.s32.totalorder %s337, %s338
      %p349 = scmp.eq.s32.totalorder %s25, 0
      %p350 = por %p348, %p349
      %p351 = scmp.ne.s32.totalorder %s337, %s338
      %p352 = scmp.eq.s32.totalorder %s26, 7
      %p353 = por %p351, %p352
      %p355 = scmp.ne.s32.totalorder %s338, %s354
      %p356 = scmp.eq.s32.totalorder %s26, 0
      %p357 = por %p355, %p356
      %p358 = scmp.le.s32.totalorder 1, %s20
      %p359 = scmp.lt.s32.totalorder %s20, 9
      %p360 = pnand %p358, %p359
      %p361 = pneg %p360
      // Predicated region
      $region9: #{tpu_custom_call.1} parent=5 // pred_check
        _
      $region10: #{tpu_custom_call.1} parent=5 // pred_check_branch
        %363 = sbr.rel (%p360) target = $region12
      $region11: #{tpu_custom_call.1} parent=5 // pred_region
        %s364 = ssub.s32 %s20, 1
        // Predicated region
        $region13: #{tpu_custom_call.1} parent=11 // pred_check
          %p365 = pneg %p322
        $region14: #{tpu_custom_call.1} parent=11 // pred_check_branch
          %367 = sbr.rel (%p365) target = $region16
        $region15: #{tpu_custom_call.1} parent=11 // pred_region
          _
        $region16: #{tpu_custom_call.1} parent=11 // pred_fallthru
          _
      $region12: #{tpu_custom_call.1} parent=5 // pred_fallthru
        _
      %p368 = scmp.lt.s32.totalorder %s20, 8
      // Predicated region
      $region17: #{tpu_custom_call.1} parent=5 // pred_check
        %p369 = pneg %p368
      $region18: #{tpu_custom_call.1} parent=5 // pred_check_branch
        %371 = sbr.rel (%p369) target = $region20
      $region19: #{tpu_custom_call.1} parent=5 // pred_region
        // Predicated region
        $region21: #{tpu_custom_call.1} parent=19 // pred_check
          %p372 = pneg %p61
        $region22: #{tpu_custom_call.1} parent=19 // pred_check_branch
          %374 = sbr.rel (%p372) target = $region24
        $region23: #{tpu_custom_call.1} parent=19 // pred_region
          %p375 = scmp.lt.s32.totalorder %s27, 1
          %s376 = scalar_select %p375, %s27, 1
          %p377 = scmp.lt.s32.totalorder %s28, 0
          %s378 = scalar_select %p377, %s28, 0
          %s379 = sadd.s32 %s378, %s376
          %s380 = smul.addr %s379, 4
          %s381 = scalar_lea.vmem %s0, %s380
        $region24: #{tpu_custom_call.1} parent=19 // pred_fallthru
          _
        // Predicated region
        $region25: #{tpu_custom_call.1} parent=19 // pred_check
          %p382 = pneg %p87
        $region26: #{tpu_custom_call.1} parent=19 // pred_check_branch
          %384 = sbr.rel (%p382) target = $region28
        $region27: #{tpu_custom_call.1} parent=19 // pred_region
          %p385 = scmp.lt.s32.totalorder %s27, 1
          %s386 = scalar_select %p385, %s27, 1
          %s387 = smul.addr %s386, 4
          %s388 = scalar_lea.vmem %s1, %s387
        $region28: #{tpu_custom_call.1} parent=19 // pred_fallthru
          _
        // Predicated region
        $region29: #{tpu_custom_call.1} parent=19 // pred_check
          %p389 = pneg %p113
        $region30: #{tpu_custom_call.1} parent=19 // pred_check_branch
          %391 = sbr.rel (%p389) target = $region32
        $region31: #{tpu_custom_call.1} parent=19 // pred_region
          %p392 = scmp.lt.s32.totalorder %s27, 1
          %s393 = scalar_select %p392, %s27, 1
          %s394 = smul.addr %s393, 4
          %s395 = scalar_lea.vmem %s2, %s394
        $region32: #{tpu_custom_call.1} parent=19 // pred_fallthru
          _
        // Predicated region
        $region33: #{tpu_custom_call.1} parent=19 // pred_check
          %p396 = pneg %p139
        $region34: #{tpu_custom_call.1} parent=19 // pred_check_branch
          %398 = sbr.rel (%p396) target = $region36
        $region35: #{tpu_custom_call.1} parent=19 // pred_region
          %p399 = scmp.lt.s32.totalorder %s29, 3
          %s400 = scalar_select %p399, %s29, 3
          %s401 = smul.addr %s400, 4
          %s402 = smul.addr %s401, 4
          %s403 = scalar_lea.vmem %s3, %s402
        $region36: #{tpu_custom_call.1} parent=19 // pred_fallthru
          _
        // Predicated region
        $region37: #{tpu_custom_call.1} parent=19 // pred_check
          %p404 = pneg %p165
        $region38: #{tpu_custom_call.1} parent=19 // pred_check_branch
          %406 = sbr.rel (%p404) target = $region40
        $region39: #{tpu_custom_call.1} parent=19 // pred_region
          %p407 = scmp.lt.s32.totalorder %s29, 3
          %s408 = scalar_select %p407, %s29, 3
          %s409 = scalar_lea.vmem %s4, %s408
        $region40: #{tpu_custom_call.1} parent=19 // pred_fallthru
          _
        // Predicated region
        $region41: #{tpu_custom_call.1} parent=19 // pred_check
          %p410 = pneg %p191
        $region42: #{tpu_custom_call.1} parent=19 // pred_check_branch
          %412 = sbr.rel (%p410) target = $region44
        $region43: #{tpu_custom_call.1} parent=19 // pred_region
          %p413 = scmp.lt.s32.totalorder %s29, 3
          %s414 = scalar_select %p413, %s29, 3
          %s415 = smul.addr %s414, 4
          %s416 = smul.addr %s415, 4
          %s417 = scalar_lea.vmem %s5, %s416
        $region44: #{tpu_custom_call.1} parent=19 // pred_fallthru
          _
        // Predicated region
        $region45: #{tpu_custom_call.1} parent=19 // pred_check
          %p418 = pneg %p217
        $region46: #{tpu_custom_call.1} parent=19 // pred_check_branch
          %420 = sbr.rel (%p418) target = $region48
        $region47: #{tpu_custom_call.1} parent=19 // pred_region
          %p421 = scmp.lt.s32.totalorder %s29, 3
          %s422 = scalar_select %p421, %s29, 3
          %s423 = scalar_lea.vmem %s6, %s422
        $region48: #{tpu_custom_call.1} parent=19 // pred_fallthru
          _
        // Predicated region
        $region49: #{tpu_custom_call.1} parent=19 // pred_check
          %p424 = pneg %p243
        $region50: #{tpu_custom_call.1} parent=19 // pred_check_branch
          %426 = sbr.rel (%p424) target = $region52
        $region51: #{tpu_custom_call.1} parent=19 // pred_region
          %p427 = scmp.lt.s32.totalorder %s29, 3
          %s428 = scalar_select %p427, %s29, 3
          %s429 = smul.addr %s428, 4
          %s430 = smul.addr %s429, 4
          %s431 = scalar_lea.vmem %s7, %s430
        $region52: #{tpu_custom_call.1} parent=19 // pred_fallthru
          _
        // Predicated region
        $region53: #{tpu_custom_call.1} parent=19 // pred_check
          %p432 = pneg %p269
        $region54: #{tpu_custom_call.1} parent=19 // pred_check_branch
          %434 = sbr.rel (%p432) target = $region56
        $region55: #{tpu_custom_call.1} parent=19 // pred_region
          %p435 = scmp.lt.s32.totalorder %s29, 3
          %s436 = scalar_select %p435, %s29, 3
          %s437 = scalar_lea.vmem %s8, %s436
        $region56: #{tpu_custom_call.1} parent=19 // pred_fallthru
          _
        // Predicated region
        $region57: #{tpu_custom_call.1} parent=19 // pred_check
          %p438 = pneg %p295
        $region58: #{tpu_custom_call.1} parent=19 // pred_check_branch
          %440 = sbr.rel (%p438) target = $region60
        $region59: #{tpu_custom_call.1} parent=19 // pred_region
          %p441 = scmp.lt.s32.totalorder %s29, 3
          %s442 = scalar_select %p441, %s29, 3
          %s443 = smul.addr %s442, 4
          %s444 = scalar_lea.vmem %s9, %s443
        $region60: #{tpu_custom_call.1} parent=19 // pred_fallthru
          _
      $region20: #{tpu_custom_call.1} parent=5 // pred_fallthru
        _
      %p445 = scmp.le.s32.totalorder 1, %s20
      %p446 = scmp.lt.s32.totalorder %s20, 9
      %p447 = pnand %p445, %p446
      %p448 = pneg %p447
      // Predicated region
      $region61: #{tpu_custom_call.1} parent=5 // pred_check
        _
      $region62: #{tpu_custom_call.1} parent=5 // pred_check_branch
        %450 = sbr.rel (%p447) target = $region64
      $region63: #{tpu_custom_call.1} parent=5 // pred_region
        %s451 = ssub.s32 %s20, 1
        %p452 = scmp.lt.s32.totalorder %s30, 1
        %s453 = scalar_select %p452, %s30, 1
        %p454 = scmp.lt.s32.totalorder %s31, 0
        %s455 = scalar_select %p454, %s31, 0
        %s456 = sadd.s32 %s455, %s453
        %s457 = smul.addr %s456, 4
        %s458 = scalar_lea.vmem %s0, %s457
        %p459 = pneg %p67
        %p460 = pneg %p64
        %p461 = scmp.lt.s32.totalorder %s30, 1
        %s462 = scalar_select %p461, %s30, 1
        %s463 = smul.addr %s462, 4
        %s464 = scalar_lea.vmem %s1, %s463
        %p465 = pneg %p93
        %p466 = pneg %p90
        %p467 = scmp.lt.s32.totalorder %s30, 1
        %s468 = scalar_select %p467, %s30, 1
        %s469 = smul.addr %s468, 4
        %s470 = scalar_lea.vmem %s2, %s469
        %p471 = pneg %p119
        %p472 = pneg %p116
        %p473 = scmp.lt.s32.totalorder %s32, 3
        %s474 = scalar_select %p473, %s32, 3
        %s475 = smul.addr %s474, 4
        %s476 = smul.addr %s475, 4
        %s477 = scalar_lea.vmem %s3, %s476
        %p478 = pneg %p145
        %p479 = pneg %p142
        %p480 = scmp.lt.s32.totalorder %s32, 3
        %s481 = scalar_select %p480, %s32, 3
        %s482 = scalar_lea.vmem %s4, %s481
        %p483 = pneg %p171
        %p484 = pneg %p168
        %p485 = scmp.lt.s32.totalorder %s32, 3
        %s486 = scalar_select %p485, %s32, 3
        %s487 = smul.addr %s486, 4
        %s488 = smul.addr %s487, 4
        %s489 = scalar_lea.vmem %s5, %s488
        %p490 = pneg %p197
        %p491 = pneg %p194
        %p492 = scmp.lt.s32.totalorder %s32, 3
        %s493 = scalar_select %p492, %s32, 3
        %s494 = scalar_lea.vmem %s6, %s493
        %p495 = pneg %p223
        %p496 = pneg %p220
        %p497 = scmp.lt.s32.totalorder %s32, 3
        %s498 = scalar_select %p497, %s32, 3
        %s499 = smul.addr %s498, 4
        %s500 = smul.addr %s499, 4
        %s501 = scalar_lea.vmem %s7, %s500
        %p502 = pneg %p249
        %p503 = pneg %p246
        %p504 = scmp.lt.s32.totalorder %s32, 3
        %s505 = scalar_select %p504, %s32, 3
        %s506 = scalar_lea.vmem %s8, %s505
        %p507 = pneg %p275
        %p508 = pneg %p272
        %p509 = scmp.lt.s32.totalorder %s32, 3
        %s510 = scalar_select %p509, %s32, 3
        %s511 = smul.addr %s510, 4
        %s512 = scalar_lea.vmem %s9, %s511
        %p513 = pneg %p301
        %p514 = pneg %p298
        %p515 = pneg %p322
        %p516 = pneg %p319
        %p517 = pneg %p350
        %p518 = pneg %p347
        %s519 = sand.u32 %s337, 1
        %s520 = scalar_lea.sflag [#allocation4], %s519
        %s521 = sand.u32 %s337, 1
        %s522 = smul.addr %s521, 8
        %s523 = scalar_lea.vmem [#allocation3], %s522
        %p524 = scmp.lt.s32.totalorder %s30, 1
        %s525 = scalar_select %p524, %s30, 1
        %p526 = scmp.lt.s32.totalorder %s31, 0
        %s527 = scalar_select %p526, %s31, 0
        %s528 = sadd.s32 %s527, %s525
        %s529 = smul.addr %s528, 4
        %s530 = scalar_lea.vmem %s0, %s529
        %p531 = scmp.lt.s32.totalorder %s30, 1
        %s532 = scalar_select %p531, %s30, 1
        %s533 = smul.addr %s532, 4
        %s534 = scalar_lea.vmem %s1, %s533
        %p535 = scmp.lt.s32.totalorder %s30, 1
        %s536 = scalar_select %p535, %s30, 1
        %s537 = smul.addr %s536, 4
        %s538 = scalar_lea.vmem %s2, %s537
        %p539 = scmp.lt.s32.totalorder %s32, 3
        %s540 = scalar_select %p539, %s32, 3
        %s541 = smul.addr %s540, 4
        %s542 = smul.addr %s541, 4
        %s543 = scalar_lea.vmem %s3, %s542
        %p544 = scmp.lt.s32.totalorder %s32, 3
        %s545 = scalar_select %p544, %s32, 3
        %s546 = scalar_lea.vmem %s4, %s545
        %p547 = scmp.lt.s32.totalorder %s32, 3
        %s548 = scalar_select %p547, %s32, 3
        %s549 = smul.addr %s548, 4
        %s550 = smul.addr %s549, 4
        %s551 = scalar_lea.vmem %s5, %s550
        %p552 = scmp.lt.s32.totalorder %s32, 3
        %s553 = scalar_select %p552, %s32, 3
        %s554 = scalar_lea.vmem %s6, %s553
        %p555 = scmp.lt.s32.totalorder %s32, 3
        %s556 = scalar_select %p555, %s32, 3
        %s557 = smul.addr %s556, 4
        %s558 = smul.addr %s557, 4
        %s559 = scalar_lea.vmem %s7, %s558
        %p560 = scmp.lt.s32.totalorder %s32, 3
        %s561 = scalar_select %p560, %s32, 3
        %s562 = scalar_lea.vmem %s8, %s561
        %p563 = scmp.lt.s32.totalorder %s32, 3
        %s564 = scalar_select %p563, %s32, 3
        %s565 = smul.addr %s564, 4
        %s566 = scalar_lea.vmem %s9, %s565
        %v568 = vld [vmem:[%s530] sm:$0xf]
        %v569 = vld [vmem:[%s534] sm:$0xf]
        %v570 = vld [vmem:[%s538] sm:$0xf]
        %v571 = vld [vmem:[%s543] sm:$0xf]
        %v572 = vld [vmem:[%s543 + $0x4] sm:$0xf]
        %v573 = vld [vmem:[%s543 + $0x8] sm:$0xf]
        %v574 = vld [vmem:[%s543 + $0xc] sm:$0xf]
        %v575 = vld [vmem:[%s546] sm:$0x1]
        %v577 = vlaneseq
        %v578 = vshrl.u32 %v577, 7
        %v579 = vsub.s32 0, %v578
        %v580 = vrot.slane %v575, %v579
        %v586 = vunpack.c.l.b16 %v571
        %v587 = vunpack.c.l.b16 %v572
        %v588 = vunpack.c.l.b16 %v573
        %v589 = vunpack.c.l.b16 %v574
        %v590 = vpack.c.b16 %v587, %v586
        %v591 = vpack.c.b16 %v589, %v588
        %vm594 = vcmask 261120
        %v596 = vsel %vm594, %v568, 0
        %598 = vmatprep.subr.bf16.mxu0 0
        %599 = vmatpush1.bf16.msra.mxu0 %v590
        %600 = vmatprep.subr.bf16.mxu0 0
        %601 = vmatpush1.bf16.msra.mxu0 %v591
        %602 = vmatprep.subr.bf16.mxu0 0
        %603 = vmatpush1.bf16.msra.mxu0 0
        %604 = vmatprep.subr.bf16.mxu0 0
        %605 = vmatpush1.bf16.msra.mxu0 0
        %606 = vmatprep.subr.bf16.mxu0 0
        %607 = vmatpush1.bf16.msra.mxu0 0
        %608 = vmatprep.subr.bf16.mxu0 0
        %609 = vmatpush1.bf16.msra.mxu0 0
        %610 = vmatprep.subr.bf16.mxu0 0
        %611 = vmatpush1.bf16.msra.mxu0 0
        %612 = vmatprep.subr.bf16.mxu0 0
        %613 = vmatpush1.bf16.msra.mxu0 0
        %614 = vmatprep.subr.bf16.mxu0 0
        %615 = vmatpush1.bf16.msra.mxu0 0
        %616 = vmatprep.subr.bf16.mxu0 0
        %617 = vmatpush1.bf16.msra.mxu0 0
        %618 = vmatprep.subr.bf16.mxu0 0
        %619 = vmatpush1.bf16.msra.mxu0 0
        %620 = vmatprep.subr.bf16.mxu0 0
        %621 = vmatpush1.bf16.msra.mxu0 0
        %622 = vmatprep.subr.bf16.mxu0 0
        %623 = vmatpush1.bf16.msra.mxu0 0
        %624 = vmatprep.subr.bf16.mxu0 0
        %625 = vmatpush1.bf16.msra.mxu0 0
        %626 = vmatprep.subr.bf16.mxu0 0
        %627 = vmatpush1.bf16.msra.mxu0 0
        %628 = vmatprep.subr.bf16.mxu0 0
        %629 = vmatpush1.bf16.msra.mxu0 0
        %630 = vmatprep.mubr.bf16.mxu0 0
        %631 = vmatmul.mubr.bf16.gmra.mrb[0].mxu0 %v596
        %v632 = vpop.f32.mrb[0].mxu0
        %v633 = vadd.f32 %v580, %v632
        %v634 = vpop.f32.mrb[0].mxu0
        %v635 = vpop.f32.mrb[0].mxu0
        %v636 = vpop.f32.mrb[0].mxu0
        %637 = vdwg.mxu0
        %v638 = vld [vmem:[%s551] sm:$0xf]
        %v639 = vld [vmem:[%s551 + $0x4] sm:$0xf]
        %v640 = vld [vmem:[%s551 + $0x8] sm:$0xf]
        %v641 = vld [vmem:[%s551 + $0xc] sm:$0xf]
        %v642 = vld [vmem:[%s554] sm:$0x1]
        %v644 = vlaneseq
        %v645 = vshrl.u32 %v644, 7
        %v646 = vsub.s32 0, %v645
        %v647 = vrot.slane %v642, %v646
        %v653 = vunpack.c.l.b16 %v638
        %v654 = vunpack.c.l.b16 %v639
        %v655 = vunpack.c.l.b16 %v640
        %v656 = vunpack.c.l.b16 %v641
        %v657 = vpack.c.b16 %v654, %v653
        %v658 = vpack.c.b16 %v656, %v655
        %v662 = vsel %vm594, %v569, 0
        %664 = vmatprep.subr.bf16.mxu0 0
        %665 = vmatpush1.bf16.msra.mxu0 %v657
        %666 = vmatprep.subr.bf16.mxu0 0
        %667 = vmatpush1.bf16.msra.mxu0 %v658
        %668 = vmatprep.subr.bf16.mxu0 0
        %669 = vmatpush1.bf16.msra.mxu0 0
        %670 = vmatprep.subr.bf16.mxu0 0
        %671 = vmatpush1.bf16.msra.mxu0 0
        %672 = vmatprep.subr.bf16.mxu0 0
        %673 = vmatpush1.bf16.msra.mxu0 0
        %674 = vmatprep.subr.bf16.mxu0 0
        %675 = vmatpush1.bf16.msra.mxu0 0
        %676 = vmatprep.subr.bf16.mxu0 0
        %677 = vmatpush1.bf16.msra.mxu0 0
        %678 = vmatprep.subr.bf16.mxu0 0
        %679 = vmatpush1.bf16.msra.mxu0 0
        %680 = vmatprep.subr.bf16.mxu0 0
        %681 = vmatpush1.bf16.msra.mxu0 0
        %682 = vmatprep.subr.bf16.mxu0 0
        %683 = vmatpush1.bf16.msra.mxu0 0
        %684 = vmatprep.subr.bf16.mxu0 0
        %685 = vmatpush1.bf16.msra.mxu0 0
        %686 = vmatprep.subr.bf16.mxu0 0
        %687 = vmatpush1.bf16.msra.mxu0 0
        %688 = vmatprep.subr.bf16.mxu0 0
        %689 = vmatpush1.bf16.msra.mxu0 0
        %690 = vmatprep.subr.bf16.mxu0 0
        %691 = vmatpush1.bf16.msra.mxu0 0
        %692 = vmatprep.subr.bf16.mxu0 0
        %693 = vmatpush1.bf16.msra.mxu0 0
        %694 = vmatprep.subr.bf16.mxu0 0
        %695 = vmatpush1.bf16.msra.mxu0 0
        %696 = vmatprep.mubr.bf16.mxu0 0
        %697 = vmatmul.mubr.bf16.gmra.mrb[0].mxu0 %v662
        %v698 = vpop.f32.mrb[0].mxu0
        %v699 = vadd.f32 %v647, %v698
        %v700 = vpop.f32.mrb[0].mxu0
        %v701 = vpop.f32.mrb[0].mxu0
        %v702 = vpop.f32.mrb[0].mxu0
        %703 = vdwg.mxu0
        %v704 = vld [vmem:[%s559] sm:$0xf]
        %v705 = vld [vmem:[%s559 + $0x4] sm:$0xf]
        %v706 = vld [vmem:[%s559 + $0x8] sm:$0xf]
        %v707 = vld [vmem:[%s559 + $0xc] sm:$0xf]
        %v708 = vld [vmem:[%s562] sm:$0x1]
        %v710 = vlaneseq
        %v711 = vshrl.u32 %v710, 7
        %v712 = vsub.s32 0, %v711
        %v713 = vrot.slane %v708, %v712
        %v719 = vunpack.c.l.b16 %v704
        %v720 = vunpack.c.l.b16 %v705
        %v721 = vunpack.c.l.b16 %v706
        %v722 = vunpack.c.l.b16 %v707
        %v723 = vpack.c.b16 %v720, %v719
        %v724 = vpack.c.b16 %v722, %v721
        %v728 = vsel %vm594, %v570, 0
        %730 = vmatprep.subr.bf16.mxu0 0
        %731 = vmatpush1.bf16.msra.mxu0 %v723
        %732 = vmatprep.subr.bf16.mxu0 0
        %733 = vmatpush1.bf16.msra.mxu0 %v724
        %734 = vmatprep.subr.bf16.mxu0 0
        %735 = vmatpush1.bf16.msra.mxu0 0
        %736 = vmatprep.subr.bf16.mxu0 0
        %737 = vmatpush1.bf16.msra.mxu0 0
        %738 = vmatprep.subr.bf16.mxu0 0
        %739 = vmatpush1.bf16.msra.mxu0 0
        %740 = vmatprep.subr.bf16.mxu0 0
        %741 = vmatpush1.bf16.msra.mxu0 0
        %742 = vmatprep.subr.bf16.mxu0 0
        %743 = vmatpush1.bf16.msra.mxu0 0
        %744 = vmatprep.subr.bf16.mxu0 0
        %745 = vmatpush1.bf16.msra.mxu0 0
        %746 = vmatprep.subr.bf16.mxu0 0
        %747 = vmatpush1.bf16.msra.mxu0 0
        %748 = vmatprep.subr.bf16.mxu0 0
        %749 = vmatpush1.bf16.msra.mxu0 0
        %750 = vmatprep.subr.bf16.mxu0 0
        %751 = vmatpush1.bf16.msra.mxu0 0
        %752 = vmatprep.subr.bf16.mxu0 0
        %753 = vmatpush1.bf16.msra.mxu0 0
        %754 = vmatprep.subr.bf16.mxu0 0
        %755 = vmatpush1.bf16.msra.mxu0 0
        %756 = vmatprep.subr.bf16.mxu0 0
        %757 = vmatpush1.bf16.msra.mxu0 0
        %758 = vmatprep.subr.bf16.mxu0 0
        %759 = vmatpush1.bf16.msra.mxu0 0
        %760 = vmatprep.subr.bf16.mxu0 0
        %761 = vmatpush1.bf16.msra.mxu0 0
        %762 = vmatprep.mubr.bf16.mxu0 0
        %763 = vmatmul.mubr.bf16.gmra.mrb[0].mxu0 %v728
        %v764 = vpop.f32.mrb[0].mxu0
        %v765 = vadd.f32 %v713, %v764
        %v766 = vpop.f32.mrb[0].mxu0
        %v767 = vpop.f32.mrb[0].mxu0
        %v768 = vpop.f32.mrb[0].mxu0
        %769 = vdwg.mxu0
        %v770 = vpack.c.bf16 %v633, %v633
        %v771 = vpack.c.bf16 %v699, %v699
        %vm772 = vcmask 64512
        %v774 = vsel %vm772, %v770, 0
        %v777 = vsel %vm772, %v771, 0
        %779 = vmatprep.subr.bf16.mxu0 0
        %780 = vmatpush1.bf16.xpose.msra.mxu0 %v777
        %781 = vmatprep.subr.bf16.mxu0 0
        %782 = vmatpush1.bf16.xpose.msra.mxu0 0
        %783 = vmatprep.subr.bf16.mxu0 0
        %784 = vmatpush1.bf16.xpose.msra.mxu0 0
        %785 = vmatprep.subr.bf16.mxu0 0
        %786 = vmatpush1.bf16.xpose.msra.mxu0 0
        %787 = vmatprep.subr.bf16.mxu0 0
        %788 = vmatpush1.bf16.xpose.msra.mxu0 0
        %789 = vmatprep.subr.bf16.mxu0 0
        %790 = vmatpush1.bf16.xpose.msra.mxu0 0
        %791 = vmatprep.subr.bf16.mxu0 0
        %792 = vmatpush1.bf16.xpose.msra.mxu0 0
        %793 = vmatprep.subr.bf16.mxu0 0
        %794 = vmatpush1.bf16.xpose.msra.mxu0 0
        %795 = vmatprep.subr.bf16.mxu0 0
        %796 = vmatpush1.bf16.xpose.msra.mxu0 0
        %797 = vmatprep.subr.bf16.mxu0 0
        %798 = vmatpush1.bf16.xpose.msra.mxu0 0
        %799 = vmatprep.subr.bf16.mxu0 0
        %800 = vmatpush1.bf16.xpose.msra.mxu0 0
        %801 = vmatprep.subr.bf16.mxu0 0
        %802 = vmatpush1.bf16.xpose.msra.mxu0 0
        %803 = vmatprep.subr.bf16.mxu0 0
        %804 = vmatpush1.bf16.xpose.msra.mxu0 0
        %805 = vmatprep.subr.bf16.mxu0 0
        %806 = vmatpush1.bf16.xpose.msra.mxu0 0
        %807 = vmatprep.subr.bf16.mxu0 0
        %808 = vmatpush1.bf16.xpose.msra.mxu0 0
        %809 = vmatprep.subr.bf16.mxu0 0
        %810 = vmatpush1.bf16.xpose.msra.mxu0 0
        %811 = vmatprep.mubr.bf16.mxu0 0
        %812 = vmatmul.mubr.bf16.gmra.mrb[0].mxu0 %v774
        %v813 = vpop.f32.mrb[0].mxu0
        %v814 = vadd.f32 0.0, %v813
        %v815 = vpop.f32.mrb[0].mxu0
        %v816 = vpop.f32.mrb[0].mxu0
        %v817 = vpop.f32.mrb[0].mxu0
        %818 = vdwg.mxu0
        %v819 = vsel %vm772, %v814, -inf
        %820 = vmax.xlane.f32.xlu0 %v819
        %v821 = vpop.xlane.xlu0 %820
        %v822 = vsub.f32 %v814, %v821
        %v823 = vmul.f32 %v822, 1.442695
        %v824 = vpow.pop %v823
        %v825 = vsel %vm772, %v824, 0.0
        %826 = vadd.xlane.f32.xlu0 %v825
        %v827 = vpop.xlane.xlu0 %826
        %v828 = vrcp.pop %v827
        %v829 = vmul.f32 %v827, %v828
        %v830 = vsub.f32 2.0, %v829
        %v831 = vmul.f32 %v828, %v830
        %v832 = vmul.f32 %v824, %v831
        %v833 = vpack.c.bf16 %v832, %v832
        %v834 = vpack.c.bf16 %v765, %v765
        %v836 = vsel %vm772, %v833, 0
        %vm838 = vcmask 1043456
        %v840 = vsel %vm838, %v834, 0
        %842 = vmatprep.subr.bf16.mxu0 0
        %843 = vmatpush1.bf16.msra.mxu0 %v840
        %844 = vmatprep.subr.bf16.mxu0 0
        %845 = vmatpush1.bf16.msra.mxu0 0
        %846 = vmatprep.subr.bf16.mxu0 0
        %847 = vmatpush1.bf16.msra.mxu0 0
        %848 = vmatprep.subr.bf16.mxu0 0
        %849 = vmatpush1.bf16.msra.mxu0 0
        %850 = vmatprep.subr.bf16.mxu0 0
        %851 = vmatpush1.bf16.msra.mxu0 0
        %852 = vmatprep.subr.bf16.mxu0 0
        %853 = vmatpush1.bf16.msra.mxu0 0
        %854 = vmatprep.subr.bf16.mxu0 0
        %855 = vmatpush1.bf16.msra.mxu0 0
        %856 = vmatprep.subr.bf16.mxu0 0
        %857 = vmatpush1.bf16.msra.mxu0 0
        %858 = vmatprep.subr.bf16.mxu0 0
        %859 = vmatpush1.bf16.msra.mxu0 0
        %860 = vmatprep.subr.bf16.mxu0 0
        %861 = vmatpush1.bf16.msra.mxu0 0
        %862 = vmatprep.subr.bf16.mxu0 0
        %863 = vmatpush1.bf16.msra.mxu0 0
        %864 = vmatprep.subr.bf16.mxu0 0
        %865 = vmatpush1.bf16.msra.mxu0 0
        %866 = vmatprep.subr.bf16.mxu0 0
        %867 = vmatpush1.bf16.msra.mxu0 0
        %868 = vmatprep.subr.bf16.mxu0 0
        %869 = vmatpush1.bf16.msra.mxu0 0
        %870 = vmatprep.subr.bf16.mxu0 0
        %871 = vmatpush1.bf16.msra.mxu0 0
        %872 = vmatprep.subr.bf16.mxu0 0
        %873 = vmatpush1.bf16.msra.mxu0 0
        %874 = vmatprep.mubr.bf16.mxu0 0
        %875 = vmatmul.mubr.bf16.gmra.mrb[0].mxu0 %v836
        %v876 = vpop.f32.mrb[0].mxu0
        %v877 = vadd.f32 0.0, %v876
        %v878 = vpop.f32.mrb[0].mxu0
        %v879 = vpop.f32.mrb[0].mxu0
        %v880 = vpop.f32.mrb[0].mxu0
        %881 = vdwg.mxu0
        %v882 = vpack.c.bf16 %v877, %v877
        %v883 = vld [vmem:[%s566] sm:$0xf]
        %v885 = vsel %vm772, %v882, 0
        %v888 = vsel %vm838, %v883, 0
        %890 = vmatprep.subr.bf16.mxu0 0
        %891 = vmatpush1.bf16.msra.mxu0 %v888
        %892 = vmatprep.subr.bf16.mxu0 0
        %893 = vmatpush1.bf16.msra.mxu0 0
        %894 = vmatprep.subr.bf16.mxu0 0
        %895 = vmatpush1.bf16.msra.mxu0 0
        %896 = vmatprep.subr.bf16.mxu0 0
        %897 = vmatpush1.bf16.msra.mxu0 0
        %898 = vmatprep.subr.bf16.mxu0 0
        %899 = vmatpush1.bf16.msra.mxu0 0
        %900 = vmatprep.subr.bf16.mxu0 0
        %901 = vmatpush1.bf16.msra.mxu0 0
        %902 = vmatprep.subr.bf16.mxu0 0
        %903 = vmatpush1.bf16.msra.mxu0 0
        %904 = vmatprep.subr.bf16.mxu0 0
        %905 = vmatpush1.bf16.msra.mxu0 0
        %906 = vmatprep.subr.bf16.mxu0 0
        %907 = vmatpush1.bf16.msra.mxu0 0
        %908 = vmatprep.subr.bf16.mxu0 0
        %909 = vmatpush1.bf16.msra.mxu0 0
        %910 = vmatprep.subr.bf16.mxu0 0
        %911 = vmatpush1.bf16.msra.mxu0 0
        %912 = vmatprep.subr.bf16.mxu0 0
        %913 = vmatpush1.bf16.msra.mxu0 0
        %914 = vmatprep.subr.bf16.mxu0 0
        %915 = vmatpush1.bf16.msra.mxu0 0
        %916 = vmatprep.subr.bf16.mxu0 0
        %917 = vmatpush1.bf16.msra.mxu0 0
        %918 = vmatprep.subr.bf16.mxu0 0
        %919 = vmatpush1.bf16.msra.mxu0 0
        %920 = vmatprep.subr.bf16.mxu0 0
        %921 = vmatpush1.bf16.msra.mxu0 0
        %922 = vmatprep.mubr.bf16.mxu0 0
        %923 = vmatmul.mubr.bf16.gmra.mrb[0].mxu0 %v885
        %v924 = vpop.f32.mrb[0].mxu0
        %v925 = vadd.f32 0.0, %v924
        %v926 = vpop.f32.mrb[0].mxu0
        %v927 = vpop.f32.mrb[0].mxu0
        %v928 = vpop.f32.mrb[0].mxu0
        %929 = vdwg.mxu0
        %p930 = scmp.eq.s32.totalorder %s32, 0
        // Predicated region
        $region65: #{tpu_custom_call.1} parent=63 // pred_check
          %p931 = pneg %p930
        $region66: #{tpu_custom_call.1} parent=63 // pred_check_branch
          %933 = sbr.rel (%p931) target = $region68
        $region67: #{tpu_custom_call.1} parent=63 // pred_region
          %934 = vst [vmem:[#allocation2] sm:$0xff] 0.0
        $region68: #{tpu_custom_call.1} parent=63 // pred_fallthru
          _
        %v935 = vld [vmem:[#allocation2] sm:$0xff]
        %v936 = vadd.f32 %v935, %v925
        %937 = vst [vmem:[#allocation2] sm:$0xff] %v936
        %p938 = scmp.eq.s32.totalorder %s32, 3
        // Predicated region
        $region69: #{tpu_custom_call.1} parent=63 // pred_check
          %p939 = pneg %p938
        $region70: #{tpu_custom_call.1} parent=63 // pred_check_branch
          %941 = sbr.rel (%p939) target = $region72
        $region71: #{tpu_custom_call.1} parent=63 // pred_region
          %v942 = vld [vmem:[#allocation2] sm:$0xff]
          %v943 = vld [vmem:[%s10] sm:$0x1]
          %v945 = vlaneseq
          %v946 = vshrl.u32 %v945, 7
          %v947 = vsub.s32 0, %v946
          %v948 = vrot.slane %v943, %v947
          %v950 = vadd.f32 %v942, %v948
          %951 = vst [vmem:[%s523] sm:$0xff] %v950
        $region72: #{tpu_custom_call.1} parent=63 // pred_fallthru
          _
        %s952 = sand.u32 %s337, 1
        %s953 = scalar_lea.sflag [#allocation4], %s952
        %s954 = sand.u32 %s337, 1
        %s955 = smul.addr %s954, 8
        %s956 = scalar_lea.vmem [#allocation3], %s955
        // Predicated region
        $region73: #{tpu_custom_call.1} parent=63 // pred_check
          %p957 = pneg %p347
        $region74: #{tpu_custom_call.1} parent=63 // pred_check_branch
          %959 = sbr.rel (%p957) target = $region76
        $region75: #{tpu_custom_call.1} parent=63 // pred_region
          %s961 = ssub.s32 128, 128
          %962 = vsyncadd %s953, %s961
          %s963 = sadd.s32 %s31, %s30
          %s964 = smul.addr %s963, 128
          %s965 = scalar_lea.hbm %s11, %s964
          %s967 = sshll.u32 %s956, 4
          %s968 = int_to_ptr.vmem [resolvable:$true] %s967
          %970 = dma.vmem_to_hbm [thread:$0]  %s968, 128, %s965, %s953
        $region76: #{tpu_custom_call.1} parent=63 // pred_fallthru
          _
      $region64: #{tpu_custom_call.1} parent=5 // pred_fallthru
        _
      %p971 = scmp.le.s32.totalorder 2, %s20
      // Predicated region
      $region77: #{tpu_custom_call.1} parent=5 // pred_check
        %p972 = pneg %p971
      $region78: #{tpu_custom_call.1} parent=5 // pred_check_branch
        %974 = sbr.rel (%p972) target = $region80
      $region79: #{tpu_custom_call.1} parent=5 // pred_region
        %s975 = ssub.s32 %s20, 2
        // Predicated region
        $region81: #{tpu_custom_call.1} parent=79 // pred_check
          %p976 = pneg %p353
        $region82: #{tpu_custom_call.1} parent=79 // pred_check_branch
          %978 = sbr.rel (%p976) target = $region84
        $region83: #{tpu_custom_call.1} parent=79 // pred_region
          %s979 = sand.u32 %s338, 1
          %s980 = scalar_lea.sflag [#allocation4], %s979
          %s981 = sand.u32 %s338, 1
          %s982 = smul.addr %s981, 8
          %s983 = scalar_lea.vmem [#allocation3], %s982
          %984 = dma.done %s980, 128
        $region84: #{tpu_custom_call.1} parent=79 // pred_fallthru
          _
      $region80: #{tpu_custom_call.1} parent=5 // pred_fallthru
        _
    $region6: #{tpu_custom_call.1} parent=1 // loop_footer
      %s24 = sadd.s32 1, %s20
    $region7: #{tpu_custom_call.1} parent=1 // loop_footer_branch
      %19 = sbr.rel target = $region3
    $region8: #{tpu_custom_call.1} parent=1 // loop_exit
      _
    %985 = vsyncpa [#allocation4], 1
    %s986 = scalar_lea.sflag [#allocation4], 1
    %987 = vsyncpa %s986, 1

</llo_original>
